<compile_context>
chip_gen: v5e
topology: v5e:2x2
jax: 0.10.0
libtpu: 0.0.40
codegen_flags: <defaults>
</compile_context>

<pallas_src>
import jax
import jax.numpy as jnp
from jax import lax
from jax.experimental import pallas as pl
from jax.experimental.pallas import tpu as pltpu


def _round_up(x, m):
    return (x + m - 1) // m * m


def _embedding_bag_fc_kernel(text_ref,      # (TT, 1)        int32 VMEM (token tile)
                             starts_ref,    # (TB, 1)        int32 VMEM
                             ends_ref,      # (TB, 1)        int32 VMEM
                             invlen_ref,    # (TB, 1)        f32   VMEM
                             emb_ref,       # (TV, D_pad)    bf16/f32 VMEM (streamed)
                             w_ref,         # (D_pad, C_pad) bf16/f32 VMEM
                             b_ref,         # (1, C_pad)     f32   VMEM
                             out_ref,       # (TB, C_pad)    f32   VMEM
                             pooled_ref):   # (TB, D_pad)    f32   scratch (sum accum)
    k = pl.program_id(1)            # vocab-tile reduction axis
    t = pl.program_id(2)            # token-tile reduction axis (innermost)
    nk = pl.num_programs(1)
    nt = pl.num_programs(2)

    TB = pooled_ref.shape[0]
    TT = text_ref.shape[0]
    TV = emb_ref.shape[0]

    @pl.when((k == 0) & (t == 0))
    def _():
        pooled_ref[...] = jnp.zeros_like(pooled_ref)

    # Binary bag-membership matrix for this (bag tile, token tile); the 1/len
    # mean scale is deferred to the epilogue so A stays exact 0/1 in bf16.
    pos = t * TT + lax.broadcasted_iota(jnp.int32, (TB, TT), 1)
    member = (pos >= starts_ref[...]) & (pos < ends_ref[...])
    a_mat = jnp.where(member, 1.0, 0.0).astype(jnp.bfloat16)       # (TB, TT)

    # One-hot of this token tile against this vocab tile (0/1, exact in bf16).
    # Padding ids (-1) and out-of-tile ids match no column.
    v_ids = k * TV + lax.broadcasted_iota(jnp.int32, (TT, TV), 1)
    onehot = jnp.where(text_ref[...] == v_ids, 1.0, 0.0).astype(jnp.bfloat16)

    # counts[b, v] = # occurrences of vocab id v among bag b's tokens in this
    # token tile.  Small non-negative integers -> exact through bf16.
    counts = jnp.dot(a_mat, onehot, preferred_element_type=jnp.float32)
    counts = counts.astype(jnp.bfloat16)

    # Partial pooled SUM for this (vocab tile, token tile); f32 accumulation.
    pooled_ref[...] += jnp.dot(counts, emb_ref[...],
                               preferred_element_type=jnp.float32)

    @pl.when((k == nk - 1) & (t == nt - 1))
    def _():
        # Deferred mean (single VPU multiply) + fused FC epilogue.
        pooled = pooled_ref[...] * invlen_ref[...]                  # (TB, D_pad)
        out_ref[...] = (
            jnp.dot(pooled.astype(w_ref.dtype), w_ref[...],
                    preferred_element_type=jnp.float32)
            + b_ref[...]
        ).astype(out_ref.dtype)


def text_classification_forward(text, offsets, emb_weight, fc_weight, fc_bias,
                                *, bag_tile=256, token_tile=1024, vocab_tile=512,
                                param_dtype=jnp.bfloat16, min_bag_tiles=1,
                                vmem_limit_bytes=None):
    """EmbeddingBag(mean) + Linear forward.

    text:    int[T] flat token stream.
    offsets: int[B] bag start offsets (PyTorch EmbeddingBag convention; the
             last bag runs to T).
    emb_weight: (V, D) f32; fc_weight: (C, D) f32 (PyTorch layout); fc_bias: (C,).
    param_dtype: storage/MXU dtype for the embedding table and FC weight
             (bf16 default: halves the dominant HBM stream and runs the MXU at
             full rate; pass jnp.float32 to reproduce f32 numerics exactly).
    min_bag_tiles: pass 2 on v7x so the 'parallel' bag axis keeps both
             TensorCores busy when the batch would otherwise fit one tile.
    Returns (B, C) f32 logits.
    """
    text = text.astype(jnp.int32)
    offsets = offsets.astype(jnp.int32)
    T = text.shape[0]
    B = offsets.shape[0]
    V, D = emb_weight.shape
    C = fc_weight.shape[0]

    # --- tile sizes (rounded so every BlockSpec satisfies the (8,128) rule) --
    TB = min(_round_up(bag_tile, 8), _round_up(B, 8))
    if min_bag_tiles > 1:
        TB = min(TB, max(8, _round_up(-(-B // min_bag_tiles), 8)))
    B_pad = _round_up(B, TB)

    TT = min(_round_up(token_tile, 128), _round_up(T, 128))
    T_pad = _round_up(T, TT)
    TV = min(_round_up(vocab_tile, 128), _round_up(V, 128))
    V_pad = _round_up(V, TV)
    D_pad = _round_up(D, 128)
    C_pad = _round_up(C, 128)

    # --- per-bag [start, end) and 1/len (len clamped to 1: empty bag -> 0) ---
    starts = offsets
    ends = jnp.concatenate([offsets[1:], jnp.array([T], jnp.int32)])
    inv_len = 1.0 / jnp.maximum(ends - starts, 1).astype(jnp.float32)

    pad_b = B_pad - B
    starts_p = jnp.pad(starts, (0, pad_b)).reshape(B_pad, 1)
    ends_p = jnp.pad(ends, (0, pad_b)).reshape(B_pad, 1)           # padded bags empty
    inv_len_p = jnp.pad(inv_len, (0, pad_b), constant_values=1.0).reshape(B_pad, 1)

    # Token ids as a column; pad with -1 (matches no vocab column).  The 128x
    # lane padding of this block is accepted and bounded by the token tile.
    text_p = jnp.pad(text, (0, T_pad - T), constant_values=-1).reshape(T_pad, 1)

    # Parameters: zero-padded; table / FC weight stored in param_dtype (bf16).
    emb_p = jnp.pad(emb_weight, ((0, V_pad - V), (0, D_pad - D))).astype(param_dtype)
    w_t = jnp.pad(fc_weight.T, ((0, D_pad - D), (0, C_pad - C))).astype(param_dtype)
    b2 = jnp.pad(fc_bias, (0, C_pad - C)).reshape(1, C_pad).astype(jnp.float32)

    grid = (B_pad // TB, V_pad // TV, T_pad // TT)

    # --- explicit, generation-aware VMEM budget (cap 48 MiB: v7x-safe) -------
    if vmem_limit_bytes is None:
        psize = jnp.dtype(param_dtype).itemsize
        est = (2 * TT * 128 * 4                       # token-id column blocks
               + 3 * TB * 128 * 4                     # starts / ends / 1/len
               + 2 * TV * D_pad * psize               # streamed emb tiles (x2 buf)
               + D_pad * C_pad * psize + 8 * C_pad * 4  # FC weight + bias
               + 2 * TB * C_pad * 4                   # logits blocks
               + TB * D_pad * 4                       # pooled accumulator
               + TT * TV * 2 + TB * TT * 2 + TB * TV * 6)  # onehot / A / counts
        vmem_limit_bytes = int(min(48 << 20, max(int(1.5 * est), 16 << 20)))

    grid_spec = pltpu.PrefetchScalarGridSpec(
        num_scalar_prefetch=0,
        grid=grid,
        in_specs=[
            # Token tile: index varies fastest -> keep default double-buffering.
            pl.BlockSpec((TT, 1), lambda i, k, t: (t, 0)),
            # Slowly varying / constant inputs: single-buffer to save VMEM.
            pl.BlockSpec((TB, 1), lambda i, k, t: (i, 0),
                         pipeline_mode=pl.Buffered(1)),             # starts
            pl.BlockSpec((TB, 1), lambda i, k, t: (i, 0),
                         pipeline_mode=pl.Buffered(1)),             # ends
            pl.BlockSpec((TB, 1), lambda i, k, t: (i, 0),
                         pipeline_mode=pl.Buffered(1)),             # 1/len
            # Embedding tile: only re-DMA'd when the vocab index changes.
            pl.BlockSpec((TV, D_pad), lambda i, k, t: (k, 0)),
            pl.BlockSpec((D_pad, C_pad), lambda i, k, t: (0, 0),
                         pipeline_mode=pl.Buffered(1)),             # fc weight^T
            pl.BlockSpec((1, C_pad), lambda i, k, t: (0, 0),
                         pipeline_mode=pl.Buffered(1)),             # fc bias
        ],
        out_specs=pl.BlockSpec((TB, C_pad), lambda i, k, t: (i, 0)),
        scratch_shapes=[pltpu.VMEM((TB, D_pad), jnp.float32)],
    )

    out = pl.pallas_call(
        _embedding_bag_fc_kernel,
        out_shape=jax.ShapeDtypeStruct((B_pad, C_pad), jnp.float32),
        grid_spec=grid_spec,
        compiler_params=pltpu.CompilerParams(
            dimension_semantics=("parallel", "arbitrary", "arbitrary"),
            vmem_limit_bytes=vmem_limit_bytes),
    )(text_p, starts_p, ends_p, inv_len_p, emb_p, w_t, b2)

    return out[:B, :C]


def _reference(text, offsets, emb_weight, fc_weight, fc_bias):
    # Pure-JAX reference mirroring torch.nn.EmbeddingBag(mode='mean') + Linear.
    T = int(text.shape[0])
    B = int(offsets.shape[0])
    pooled = []
    for b in range(B):
        start = int(offsets[b])
        end = int(offsets[b + 1]) if b + 1 < B else T
        rows = emb_weight[text[start:end]]
        pooled.append(rows.mean(axis=0))
    pooled = jnp.stack(pooled)
    return pooled @ fc_weight.T + fc_bias


if __name__ == "__main__":
    # ---- Test 1: module-sized toy case, default bf16 parameters ------------
    vocab_size, embed_dim, num_class = 32, 32, 4
    batch, total_tokens = 2, 8

    key = jax.random.PRNGKey(0)
    k_emb, k_fc, k_txt = jax.random.split(key, 3)

    # Deterministic init matching init_weights(): uniform(-0.5, 0.5), bias zero.
    emb_weight = jax.random.uniform(
        k_emb, (vocab_size, embed_dim), jnp.float32, -0.5, 0.5)
    fc_weight = jax.random.uniform(
        k_fc, (num_class, embed_dim), jnp.float32, -0.5, 0.5)
    fc_bias = jnp.zeros((num_class,), jnp.float32)

    text = jax.random.randint(k_txt, (total_tokens,), 0, vocab_size, jnp.int32)
    offsets = jnp.array([0, 5], dtype=jnp.int32)   # bag0: tokens 0..4, bag1: 5..7

    out = text_classification_forward(text, offsets, emb_weight, fc_weight, fc_bias)
    jax.block_until_ready(out)

    ref = _reference(text, offsets, emb_weight, fc_weight, fc_bias)
    assert out.shape == (batch, num_class)
    # bf16 parameter storage -> compare at bf16-appropriate tolerance.
    assert jnp.allclose(out, ref, atol=2e-2, rtol=2e-2), (out, ref)

    # ---- Test 2: multi-tile grid (bag/vocab/token tiling), f32 params ------
    k_len, k_txt2, k_emb2, k_fc2 = jax.random.split(jax.random.PRNGKey(1), 4)
    B2, V2, D2, C2 = 11, 200, 48, 7
    lengths = jax.random.randint(k_len, (B2,), 1, 60, jnp.int32)
    offsets2 = jnp.concatenate(
        [jnp.zeros((1,), jnp.int32), jnp.cumsum(lengths)[:-1].astype(jnp.int32)])
    T2 = int(jnp.sum(lengths))
    emb_w2 = jax.random.uniform(k_emb2, (V2, D2), jnp.float32, -0.5, 0.5)
    fc_w2 = jax.random.uniform(k_fc2, (C2, D2), jnp.float32, -0.5, 0.5)
    fc_b2 = jnp.zeros((C2,), jnp.float32)
    text2 = jax.random.randint(k_txt2, (T2,), 0, V2, jnp.int32)

    out2 = text_classification_forward(
        text2, offsets2, emb_w2, fc_w2, fc_b2,
        bag_tile=8, token_tile=128, vocab_tile=128,   # force a (2,2,N) grid
        param_dtype=jnp.float32)
    jax.block_until_ready(out2)

    ref2 = _reference(text2, offsets2, emb_w2, fc_w2, fc_b2)
    assert out2.shape == (B2, C2)
    assert jnp.allclose(out2, ref2, atol=1e-4, rtol=1e-4), (out2, ref2)

    print("KERNEL_OK")
</pallas_src>

<mosaic_0001>
module attributes {stable_mosaic.version = 11 : i64} {
  func.func @_embedding_bag_fc_kernel(%arg0: i32, %arg1: i32, %arg2: i32, %arg3: memref<128x1xi32, #tpu.memory_space<vmem>>, %arg4: memref<8x1xi32, #tpu.memory_space<vmem>>, %arg5: memref<8x1xi32, #tpu.memory_space<vmem>>, %arg6: memref<8x1xf32, #tpu.memory_space<vmem>>, %arg7: memref<128x128xbf16, #tpu.memory_space<vmem>>, %arg8: memref<128x128xbf16, #tpu.memory_space<vmem>>, %arg9: memref<1x128xf32, #tpu.memory_space<vmem>>, %arg10: memref<8x128xf32, #tpu.memory_space<vmem>>, %arg11: memref<8x128xf32, #tpu.memory_space<vmem>>) attributes {dimension_semantics = [#tpu.dimension_semantics<parallel>, #tpu.dimension_semantics<arbitrary>, #tpu.dimension_semantics<arbitrary>], iteration_bounds = array<i64: 1, 1, 1>, scalar_prefetch = 0 : i64, scratch_operands = 1 : i64, tpu.core_type = #tpu.core_type<tc>, window_params = [{transform_indices = @transform_0, window_bounds = array<i64: 128, 1>}, {pipeline_mode = #tpu.pipeline_mode<synchronous>, transform_indices = @transform_1, window_bounds = array<i64: 8, 1>}, {pipeline_mode = #tpu.pipeline_mode<synchronous>, transform_indices = @transform_2, window_bounds = array<i64: 8, 1>}, {pipeline_mode = #tpu.pipeline_mode<synchronous>, transform_indices = @transform_3, window_bounds = array<i64: 8, 1>}, {transform_indices = @transform_4, window_bounds = array<i64: 128, 128>}, {pipeline_mode = #tpu.pipeline_mode<synchronous>, transform_indices = @transform_5, window_bounds = array<i64: 128, 128>}, {pipeline_mode = #tpu.pipeline_mode<synchronous>, transform_indices = @transform_6, window_bounds = array<i64: 1, 128>}, {transform_indices = @transform_7, window_bounds = array<i64: 8, 128>}]} {
    %c0_i32 = arith.constant 0 : i32
    %0 = arith.cmpi eq, %arg1, %c0_i32 : i32
    %c0_i32_0 = arith.constant 0 : i32
    %1 = arith.cmpi eq, %arg2, %c0_i32_0 : i32
    %2 = arith.andi %0, %1 : i1
    %3 = arith.extui %2 : i1 to i32
    %c0_i32_1 = arith.constant 0 : i32
    %4 = arith.cmpi ne, %3, %c0_i32_1 : i32
    scf.if %4 {
      %cst_22 = arith.constant 0.000000e+00 : f32
      %43 = vector.broadcast %cst_22 : f32 to vector<8x128xf32>
      %c0_23 = arith.constant 0 : index
      %c0_24 = arith.constant 0 : index
      %44 = vector.load %arg11[%c0_23, %c0_24] : memref<8x128xf32, #tpu.memory_space<vmem>>, vector<8x128xf32>
      tpu.vector_store %arg11[%c0_23, %c0_24], %43 {strides = array<i32>} : memref<8x128xf32, #tpu.memory_space<vmem>>, vector<8x128xf32>,
    } else {
    }
    %c128_i32 = arith.constant 128 : i32
    %5 = arith.muli %arg2, %c128_i32 : i32
    %6 = tpu.iota {dimensions = array<i32: 1>} : vector<8x128xi32>
    %7 = vector.broadcast %5 : i32 to vector<8x128xi32>
    %8 = arith.addi %7, %6 : vector<8x128xi32>
    %c0 = arith.constant 0 : index
    %c0_2 = arith.constant 0 : index
    %9 = vector.load %arg4[%c0, %c0_2] : memref<8x1xi32, #tpu.memory_space<vmem>>, vector<8x1xi32>
    %10 = vector.broadcast %9 : vector<8x1xi32> to vector<8x128xi32>
    %11 = arith.cmpi sge, %8, %10 : vector<8x128xi32>
    %c0_3 = arith.constant 0 : index
    %c0_4 = arith.constant 0 : index
    %12 = vector.load %arg5[%c0_3, %c0_4] : memref<8x1xi32, #tpu.memory_space<vmem>>, vector<8x1xi32>
    %13 = vector.broadcast %12 : vector<8x1xi32> to vector<8x128xi32>
    %14 = arith.cmpi slt, %8, %13 : vector<8x128xi32>
    %15 = arith.andi %11, %14 : vector<8x128xi1>
    %cst = arith.constant 1.000000e+00 : f32
    %cst_5 = arith.constant 0.000000e+00 : f32
    %16 = vector.broadcast %cst : f32 to vector<8x128xf32>
    %17 = vector.broadcast %cst_5 : f32 to vector<8x128xf32>
    %18 = arith.select %15, %16, %17 : vector<8x128xi1>, vector<8x128xf32>
    %19 = arith.truncf %18 : vector<8x128xf32> to vector<8x128xbf16>
    %c128_i32_6 = arith.constant 128 : i32
    %20 = arith.muli %arg1, %c128_i32_6 : i32
    %21 = tpu.iota {dimensions = array<i32: 1>} : vector<128x128xi32>
    %22 = vector.broadcast %20 : i32 to vector<128x128xi32>
    %23 = arith.addi %22, %21 : vector<128x128xi32>
    %c0_7 = arith.constant 0 : index
    %c0_8 = arith.constant 0 : index
    %24 = vector.load %arg3[%c0_7, %c0_8] : memref<128x1xi32, #tpu.memory_space<vmem>>, vector<128x1xi32>
    %25 = vector.broadcast %24 : vector<128x1xi32> to vector<128x128xi32>
    %26 = arith.cmpi eq, %25, %23 : vector<128x128xi32>
    %cst_9 = arith.constant 1.000000e+00 : f32
    %cst_10 = arith.constant 0.000000e+00 : f32
    %27 = vector.broadcast %cst_9 : f32 to vector<128x128xf32>
    %28 = vector.broadcast %cst_10 : f32 to vector<128x128xf32>
    %29 = arith.select %26, %27, %28 : vector<128x128xi1>, vector<128x128xf32>
    %30 = arith.truncf %29 : vector<128x128xf32> to vector<128x128xbf16>
    %cst_11 = arith.constant dense<0.000000e+00> : vector<8x128xf32>
    %31 = tpu.matmul %19, %30, %cst_11 {dimension_numbers = #tpu.dot_dimension_numbers<[1], [0], [0], [1], [0, 0, 1, 1], [], []>} : vector<8x128xbf16>, vector<128x128xbf16>, vector<8x128xf32> -> vector<8x128xf32>
    %32 = arith.truncf %31 : vector<8x128xf32> to vector<8x128xbf16>
    %c0_12 = arith.constant 0 : index
    %c0_13 = arith.constant 0 : index
    %33 = vector.load %arg11[%c0_12, %c0_13] : memref<8x128xf32, #tpu.memory_space<vmem>>, vector<8x128xf32>
    %c0_14 = arith.constant 0 : index
    %c0_15 = arith.constant 0 : index
    %34 = vector.load %arg7[%c0_14, %c0_15] : memref<128x128xbf16, #tpu.memory_space<vmem>>, vector<128x128xbf16>
    %cst_16 = arith.constant dense<0.000000e+00> : vector<8x128xf32>
    %35 = tpu.matmul %32, %34, %cst_16 {dimension_numbers = #tpu.dot_dimension_numbers<[1], [0], [0], [1], [0, 0, 1, 1], [], []>} : vector<8x128xbf16>, vector<128x128xbf16>, vector<8x128xf32> -> vector<8x128xf32>
    %36 = arith.addf %33, %35 : vector<8x128xf32>
    %c0_17 = arith.constant 0 : index
    %c0_18 = arith.constant 0 : index
    %37 = vector.load %arg11[%c0_17, %c0_18] : memref<8x128xf32, #tpu.memory_space<vmem>>, vector<8x128xf32>
    tpu.vector_store %arg11[%c0_17, %c0_18], %36 {strides = array<i32>} : memref<8x128xf32, #tpu.memory_space<vmem>>, vector<8x128xf32>,
    %c0_i32_19 = arith.constant 0 : i32
    %38 = arith.cmpi eq, %arg1, %c0_i32_19 : i32
    %c0_i32_20 = arith.constant 0 : i32
    %39 = arith.cmpi eq, %arg2, %c0_i32_20 : i32
    %40 = arith.andi %38, %39 : i1
    %41 = arith.extui %40 : i1 to i32
    %c0_i32_21 = arith.constant 0 : i32
    %42 = arith.cmpi ne, %41, %c0_i32_21 : i32
    scf.if %42 {
      %c0_22 = arith.constant 0 : index
      %c0_23 = arith.constant 0 : index
      %43 = vector.load %arg11[%c0_22, %c0_23] : memref<8x128xf32, #tpu.memory_space<vmem>>, vector<8x128xf32>
      %c0_24 = arith.constant 0 : index
      %c0_25 = arith.constant 0 : index
      %44 = vector.load %arg6[%c0_24, %c0_25] : memref<8x1xf32, #tpu.memory_space<vmem>>, vector<8x1xf32>
      %45 = vector.broadcast %44 : vector<8x1xf32> to vector<8x128xf32>
      %46 = arith.mulf %43, %45 : vector<8x128xf32>
      %47 = arith.truncf %46 : vector<8x128xf32> to vector<8x128xbf16>
      %c0_26 = arith.constant 0 : index
      %c0_27 = arith.constant 0 : index
      %48 = vector.load %arg8[%c0_26, %c0_27] : memref<128x128xbf16, #tpu.memory_space<vmem>>, vector<128x128xbf16>
      %cst_28 = arith.constant dense<0.000000e+00> : vector<8x128xf32>
      %49 = tpu.matmul %47, %48, %cst_28 {dimension_numbers = #tpu.dot_dimension_numbers<[1], [0], [0], [1], [0, 0, 1, 1], [], []>} : vector<8x128xbf16>, vector<128x128xbf16>, vector<8x128xf32> -> vector<8x128xf32>
      %c0_29 = arith.constant 0 : index
      %c0_30 = arith.constant 0 : index
      %50 = vector.load %arg9[%c0_29, %c0_30] : memref<1x128xf32, #tpu.memory_space<vmem>>, vector<1x128xf32>
      %51 = vector.broadcast %50 : vector<1x128xf32> to vector<8x128xf32>
      %52 = arith.addf %49, %51 : vector<8x128xf32>
      %c0_31 = arith.constant 0 : index
      %c0_32 = arith.constant 0 : index
      %53 = vector.load %arg10[%c0_31, %c0_32] : memref<8x128xf32, #tpu.memory_space<vmem>>, vector<8x128xf32>
      tpu.vector_store %arg10[%c0_31, %c0_32], %52 {strides = array<i32>} : memref<8x128xf32, #tpu.memory_space<vmem>>, vector<8x128xf32>,
    } else {
    }
    return
  }
  func.func @transform_0(%arg0: i32, %arg1: i32, %arg2: i32) -> (i32, i32) {
    %c0_i32 = arith.constant 0 : i32
    %c0_i32_0 = arith.constant 0 : i32
    return %arg2, %c0_i32 : i32, i32
  }
  func.func @transform_1(%arg0: i32, %arg1: i32, %arg2: i32) -> (i32, i32) {
    %c0_i32 = arith.constant 0 : i32
    %c0_i32_0 = arith.constant 0 : i32
    return %arg0, %c0_i32 : i32, i32
  }
  func.func @transform_2(%arg0: i32, %arg1: i32, %arg2: i32) -> (i32, i32) {
    %c0_i32 = arith.constant 0 : i32
    %c0_i32_0 = arith.constant 0 : i32
    return %arg0, %c0_i32 : i32, i32
  }
  func.func @transform_3(%arg0: i32, %arg1: i32, %arg2: i32) -> (i32, i32) {
    %c0_i32 = arith.constant 0 : i32
    %c0_i32_0 = arith.constant 0 : i32
    return %arg0, %c0_i32 : i32, i32
  }
  func.func @transform_4(%arg0: i32, %arg1: i32, %arg2: i32) -> (i32, i32) {
    %c0_i32 = arith.constant 0 : i32
    %c0_i32_0 = arith.constant 0 : i32
    return %arg1, %c0_i32 : i32, i32
  }
  func.func @transform_5(%arg0: i32, %arg1: i32, %arg2: i32) -> (i32, i32) {
    %c0_i32 = arith.constant 0 : i32
    %c0_i32_0 = arith.constant 0 : i32
    %c0_i32_1 = arith.constant 0 : i32
    return %c0_i32, %c0_i32_0 : i32, i32
  }
  func.func @transform_6(%arg0: i32, %arg1: i32, %arg2: i32) -> (i32, i32) {
    %c0_i32 = arith.constant 0 : i32
    %c0_i32_0 = arith.constant 0 : i32
    %c0_i32_1 = arith.constant 0 : i32
    return %c0_i32, %c0_i32_0 : i32, i32
  }
  func.func @transform_7(%arg0: i32, %arg1: i32, %arg2: i32) -> (i32, i32) {
    %c0_i32 = arith.constant 0 : i32
    %c0_i32_0 = arith.constant 0 : i32
    return %arg0, %c0_i32 : i32, i32
  }
}

</mosaic_0001>

<llo_original>
// kernel: tpu_custom_call.1
$region0: #{tpu_custom_call.1}
  #allocation0 [shape = 'u32[]', space=smem, size = 0x4, offset = 0x4, fixed_abs, tag = 'smem constant byte address 0x4 - core index']
  #allocation1 [shape = 'u32[72,128]{1,0:T(1,128)}', space=vmem, size = 0x9000, scoped, tag = 'internal scratch']
  #allocation2 [shape = 'f32[8,128]{1,0:T(8,128)}', space=vmem, size = 0x1000, scoped, tag = 'scratch operand']
  %s0 = inlined_call_operand.vmem [shape: s32[128,1], index: 0, kind: input, shape index: {}]
  %s1 = inlined_call_operand.vmem [shape: s32[8,1], index: 1, kind: input, shape index: {}]
  %s2 = inlined_call_operand.vmem [shape: s32[8,1], index: 2, kind: input, shape index: {}]
  %s3 = inlined_call_operand.vmem [shape: f32[8,1], index: 3, kind: input, shape index: {}]
  %s4 = inlined_call_operand.vmem [shape: bf16[128,128], index: 4, kind: input, shape index: {}]
  %s5 = inlined_call_operand.vmem [shape: bf16[128,128], index: 5, kind: input, shape index: {}]
  %s6 = inlined_call_operand.vmem [shape: f32[1,128], index: 6, kind: input, shape index: {}]
  %s7 = inlined_call_operand.hbm [shape: f32[8,128], index: 7, kind: output, shape index: {}]
  %s8 = sld [smem:[#allocation0]]
  $region46: #{tpu_custom_call.1} parent=0
    _
  %s10 = ssub.s32 1, %s8
  %s11 = scalar_select 0, %s10, %s8
  $region1: #{tpu_custom_call.1} parent=0
    #allocation3 [shape = 'u8[4096]{0}', space=vmem, size = 0x1000, scoped, tag = 'output window, operand 0, single buffered']
    #allocation4 [shape = 's32[1]{0}', space=sflag, size = 0x4, scoped, tag = 'scoped memory for tpu_custom_call.1']
    %12 = vsyncpa [#allocation4], 0
    // Predicated region
    $region2: #{tpu_custom_call.1} parent=1 // pred_check
      _
    $region3: #{tpu_custom_call.1} parent=1 // pred_check_branch
      %14 = sbr.rel (0) target = $region5
    $region4: #{tpu_custom_call.1} parent=1 // pred_region
      _
    $region5: #{tpu_custom_call.1} parent=1 // pred_fallthru
      _
    // Predicated region
    $region6: #{tpu_custom_call.1} parent=1 // pred_check
      _
    $region7: #{tpu_custom_call.1} parent=1 // pred_check_branch
      %16 = sbr.rel (0) target = $region9
    $region8: #{tpu_custom_call.1} parent=1 // pred_region
      _
    $region9: #{tpu_custom_call.1} parent=1 // pred_fallthru
      _
    // Predicated region
    $region10: #{tpu_custom_call.1} parent=1 // pred_check
      _
    $region11: #{tpu_custom_call.1} parent=1 // pred_check_branch
      %18 = sbr.rel (0) target = $region13
    $region12: #{tpu_custom_call.1} parent=1 // pred_region
      _
    $region13: #{tpu_custom_call.1} parent=1 // pred_fallthru
      _
    // Predicated region
    $region14: #{tpu_custom_call.1} parent=1 // pred_check
      _
    $region15: #{tpu_custom_call.1} parent=1 // pred_check_branch
      %20 = sbr.rel (0) target = $region17
    $region16: #{tpu_custom_call.1} parent=1 // pred_region
      _
    $region17: #{tpu_custom_call.1} parent=1 // pred_fallthru
      _
    // Predicated region
    $region18: #{tpu_custom_call.1} parent=1 // pred_check
      _
    $region19: #{tpu_custom_call.1} parent=1 // pred_check_branch
      %22 = sbr.rel (0) target = $region21
    $region20: #{tpu_custom_call.1} parent=1 // pred_region
      _
    $region21: #{tpu_custom_call.1} parent=1 // pred_fallthru
      _
    // Predicated region
    $region22: #{tpu_custom_call.1} parent=1 // pred_check
      _
    $region23: #{tpu_custom_call.1} parent=1 // pred_check_branch
      %24 = sbr.rel (0) target = $region25
    $region24: #{tpu_custom_call.1} parent=1 // pred_region
      _
    $region25: #{tpu_custom_call.1} parent=1 // pred_fallthru
      _
    // Predicated region
    $region26: #{tpu_custom_call.1} parent=1 // pred_check
      _
    $region27: #{tpu_custom_call.1} parent=1 // pred_check_branch
      %26 = sbr.rel (0) target = $region29
    $region28: #{tpu_custom_call.1} parent=1 // pred_region
      _
    $region29: #{tpu_custom_call.1} parent=1 // pred_fallthru
      _
    %p27 = scmp.eq.s32.totalorder 0, 0
    %p28 = scmp.eq.s32.totalorder 0, 0
    %p29 = pnand %p27, %p28
    %p30 = pneg %p29
    // Predicated region
    $region30: #{tpu_custom_call.1} parent=1 // pred_check
      _
    $region31: #{tpu_custom_call.1} parent=1 // pred_check_branch
      %32 = sbr.rel (%p29) target = $region33
    $region32: #{tpu_custom_call.1} parent=1 // pred_region
      %33 = vst [vmem:[#allocation2] sm:$0xff] 0.0
    $region33: #{tpu_custom_call.1} parent=1 // pred_fallthru
      _
    %s34 = smul.u32 0, 128
    %v35 = vlaneseq
    %v36 = vand.u32 %v35, 127
    %v37 = vstv %s34
    %v38 = vadd.s32 %v37, %v36
    %v39 = vld [vmem:[%s1] sm:$0xff]
    %40 = vset.pattern.permute.xlu0 0
    %41 = vperm.xlu0 %40, %v39
    %v42 = vpop.permute.xlu0 %41
    %vm43 = vcmp.ge.s32.totalorder %v38, %v42
    %v44 = vld [vmem:[%s2] sm:$0xff]
    %45 = vset.pattern.permute.xlu0 0
    %46 = vperm.xlu0 %45, %v44
    %v47 = vpop.permute.xlu0 %46
    %vm48 = vcmp.lt.s32.totalorder %v38, %v47
    %vm49 = vmand %vm43, %vm48
    %v50 = vsel %vm49, 1.0, 0.0
    %v51 = vpack.c.bf16 %v50, %v50
    %s52 = smul.u32 0, 128
    %v53 = vstv %s52
    %v54 = vadd.s32 %v53, %v36
    %v55 = vld [vmem:[%s0] sm:$0xff]
    %v56 = vld [vmem:[%s0 + $0x8] sm:$0xff]
    %v57 = vld [vmem:[%s0 + $0x10] sm:$0xff]
    %v58 = vld [vmem:[%s0 + $0x18] sm:$0xff]
    %v59 = vld [vmem:[%s0 + $0x20] sm:$0xff]
    %v60 = vld [vmem:[%s0 + $0x28] sm:$0xff]
    %v61 = vld [vmem:[%s0 + $0x30] sm:$0xff]
    %v62 = vld [vmem:[%s0 + $0x38] sm:$0xff]
    %v63 = vld [vmem:[%s0 + $0x40] sm:$0xff]
    %v64 = vld [vmem:[%s0 + $0x48] sm:$0xff]
    %v65 = vld [vmem:[%s0 + $0x50] sm:$0xff]
    %v66 = vld [vmem:[%s0 + $0x58] sm:$0xff]
    %v67 = vld [vmem:[%s0 + $0x60] sm:$0xff]
    %v68 = vld [vmem:[%s0 + $0x68] sm:$0xff]
    %v69 = vld [vmem:[%s0 + $0x70] sm:$0xff]
    %v70 = vld [vmem:[%s0 + $0x78] sm:$0xff]
    %71 = vset.pattern.permute.xlu0 0
    %72 = vperm.xlu0 %71, %v55
    %v73 = vpop.permute.xlu0 %72
    %74 = vset.pattern.permute.xlu0 0
    %75 = vperm.xlu0 %74, %v56
    %v76 = vpop.permute.xlu0 %75
    %77 = vset.pattern.permute.xlu0 0
    %78 = vperm.xlu0 %77, %v57
    %v79 = vpop.permute.xlu0 %78
    %80 = vset.pattern.permute.xlu0 0
    %81 = vperm.xlu0 %80, %v58
    %v82 = vpop.permute.xlu0 %81
    %83 = vset.pattern.permute.xlu0 0
    %84 = vperm.xlu0 %83, %v59
    %v85 = vpop.permute.xlu0 %84
    %86 = vset.pattern.permute.xlu0 0
    %87 = vperm.xlu0 %86, %v60
    %v88 = vpop.permute.xlu0 %87
    %89 = vset.pattern.permute.xlu0 0
    %90 = vperm.xlu0 %89, %v61
    %v91 = vpop.permute.xlu0 %90
    %92 = vset.pattern.permute.xlu0 0
    %93 = vperm.xlu0 %92, %v62
    %v94 = vpop.permute.xlu0 %93
    %95 = vset.pattern.permute.xlu0 0
    %96 = vperm.xlu0 %95, %v63
    %v97 = vpop.permute.xlu0 %96
    %98 = vset.pattern.permute.xlu0 0
    %99 = vperm.xlu0 %98, %v64
    %v100 = vpop.permute.xlu0 %99
    %101 = vset.pattern.permute.xlu0 0
    %102 = vperm.xlu0 %101, %v65
    %v103 = vpop.permute.xlu0 %102
    %104 = vset.pattern.permute.xlu0 0
    %105 = vperm.xlu0 %104, %v66
    %v106 = vpop.permute.xlu0 %105
    %107 = vset.pattern.permute.xlu0 0
    %108 = vperm.xlu0 %107, %v67
    %v109 = vpop.permute.xlu0 %108
    %110 = vset.pattern.permute.xlu0 0
    %111 = vperm.xlu0 %110, %v68
    %v112 = vpop.permute.xlu0 %111
    %113 = vset.pattern.permute.xlu0 0
    %114 = vperm.xlu0 %113, %v69
    %v115 = vpop.permute.xlu0 %114
    %116 = vset.pattern.permute.xlu0 0
    %117 = vperm.xlu0 %116, %v70
    %v118 = vpop.permute.xlu0 %117
    %vm119 = vcmp.eq.s32.totalorder %v73, %v54
    %vm120 = vcmp.eq.s32.totalorder %v76, %v54
    %vm121 = vcmp.eq.s32.totalorder %v79, %v54
    %vm122 = vcmp.eq.s32.totalorder %v82, %v54
    %vm123 = vcmp.eq.s32.totalorder %v85, %v54
    %vm124 = vcmp.eq.s32.totalorder %v88, %v54
    %vm125 = vcmp.eq.s32.totalorder %v91, %v54
    %vm126 = vcmp.eq.s32.totalorder %v94, %v54
    %vm127 = vcmp.eq.s32.totalorder %v97, %v54
    %vm128 = vcmp.eq.s32.totalorder %v100, %v54
    %vm129 = vcmp.eq.s32.totalorder %v103, %v54
    %vm130 = vcmp.eq.s32.totalorder %v106, %v54
    %vm131 = vcmp.eq.s32.totalorder %v109, %v54
    %vm132 = vcmp.eq.s32.totalorder %v112, %v54
    %vm133 = vcmp.eq.s32.totalorder %v115, %v54
    %vm134 = vcmp.eq.s32.totalorder %v118, %v54
    %v135 = vsel %vm119, 1.0, 0.0
    %v136 = vsel %vm120, 1.0, 0.0
    %v137 = vsel %vm121, 1.0, 0.0
    %v138 = vsel %vm122, 1.0, 0.0
    %v139 = vsel %vm123, 1.0, 0.0
    %v140 = vsel %vm124, 1.0, 0.0
    %v141 = vsel %vm125, 1.0, 0.0
    %v142 = vsel %vm126, 1.0, 0.0
    %v143 = vsel %vm127, 1.0, 0.0
    %v144 = vsel %vm128, 1.0, 0.0
    %v145 = vsel %vm129, 1.0, 0.0
    %v146 = vsel %vm130, 1.0, 0.0
    %v147 = vsel %vm131, 1.0, 0.0
    %v148 = vsel %vm132, 1.0, 0.0
    %v149 = vsel %vm133, 1.0, 0.0
    %v150 = vsel %vm134, 1.0, 0.0
    %v151 = vpack.c.bf16 %v136, %v135
    %v152 = vpack.c.bf16 %v138, %v137
    %v153 = vpack.c.bf16 %v140, %v139
    %v154 = vpack.c.bf16 %v142, %v141
    %v155 = vpack.c.bf16 %v144, %v143
    %v156 = vpack.c.bf16 %v146, %v145
    %v157 = vpack.c.bf16 %v148, %v147
    %v158 = vpack.c.bf16 %v150, %v149
    %159 = vmatpush.bf16.msra.mxu0 %v158
    %160 = vmatpush.bf16.msra.mxu0 %v157
    %161 = vmatpush.bf16.msra.mxu0 %v156
    %162 = vmatpush.bf16.msra.mxu0 %v155
    %163 = vmatpush.bf16.msra.mxu0 %v154
    %164 = vmatpush.bf16.msra.mxu0 %v153
    %165 = vmatpush.bf16.msra.mxu0 %v152
    %166 = vmatpush.bf16.msra.mxu0 %v151
    %167 = vmatmul.bf16.gmra.mxu0 %v51
    %v168 = vpop.f32.mrf.mxu0
    %v169 = vadd.f32 0.0, %v168
    %v170 = vpop.f32.mrf.mxu0
    %171 = vdwg.mxu0
    %v172 = vpack.c.bf16 %v169, %v169
    %v173 = vld [vmem:[#allocation2] sm:$0xff]
    %v174 = vld [vmem:[%s4] sm:$0xf]
    %v175 = vld [vmem:[%s4 + $0x4] sm:$0xf]
    %v176 = vld [vmem:[%s4 + $0x8] sm:$0xf]
    %v177 = vld [vmem:[%s4 + $0xc] sm:$0xf]
    %v178 = vld [vmem:[%s4 + $0x10] sm:$0xf]
    %v179 = vld [vmem:[%s4 + $0x14] sm:$0xf]
    %v180 = vld [vmem:[%s4 + $0x18] sm:$0xf]
    %v181 = vld [vmem:[%s4 + $0x1c] sm:$0xf]
    %v182 = vld [vmem:[%s4 + $0x20] sm:$0xf]
    %v183 = vld [vmem:[%s4 + $0x24] sm:$0xf]
    %v184 = vld [vmem:[%s4 + $0x28] sm:$0xf]
    %v185 = vld [vmem:[%s4 + $0x2c] sm:$0xf]
    %v186 = vld [vmem:[%s4 + $0x30] sm:$0xf]
    %v187 = vld [vmem:[%s4 + $0x34] sm:$0xf]
    %v188 = vld [vmem:[%s4 + $0x38] sm:$0xf]
    %v189 = vld [vmem:[%s4 + $0x3c] sm:$0xf]
    %v206 = vunpack.c.l.b16 %v174
    %v207 = vunpack.c.l.b16 %v175
    %v208 = vunpack.c.l.b16 %v176
    %v209 = vunpack.c.l.b16 %v177
    %v210 = vunpack.c.l.b16 %v178
    %v211 = vunpack.c.l.b16 %v179
    %v212 = vunpack.c.l.b16 %v180
    %v213 = vunpack.c.l.b16 %v181
    %v214 = vunpack.c.l.b16 %v182
    %v215 = vunpack.c.l.b16 %v183
    %v216 = vunpack.c.l.b16 %v184
    %v217 = vunpack.c.l.b16 %v185
    %v218 = vunpack.c.l.b16 %v186
    %v219 = vunpack.c.l.b16 %v187
    %v220 = vunpack.c.l.b16 %v188
    %v221 = vunpack.c.l.b16 %v189
    %v222 = vpack.c.b16 %v207, %v206
    %v223 = vpack.c.b16 %v209, %v208
    %v224 = vpack.c.b16 %v211, %v210
    %v225 = vpack.c.b16 %v213, %v212
    %v226 = vpack.c.b16 %v215, %v214
    %v227 = vpack.c.b16 %v217, %v216
    %v228 = vpack.c.b16 %v219, %v218
    %v229 = vpack.c.b16 %v221, %v220
    %238 = vmatpush.bf16.msra.mxu0 %v229
    %239 = vmatpush.bf16.msra.mxu0 %v228
    %240 = vmatpush.bf16.msra.mxu0 %v227
    %241 = vmatpush.bf16.msra.mxu0 %v226
    %242 = vmatpush.bf16.msra.mxu0 %v225
    %243 = vmatpush.bf16.msra.mxu0 %v224
    %244 = vmatpush.bf16.msra.mxu0 %v223
    %245 = vmatpush.bf16.msra.mxu0 %v222
    %246 = vmatmul.bf16.gmra.mxu0 %v172
    %v247 = vpop.f32.mrf.mxu0
    %v248 = vadd.f32 0.0, %v247
    %v249 = vpop.f32.mrf.mxu0
    %250 = vdwg.mxu0
    %v251 = vadd.f32 %v173, %v248
    %252 = vst [vmem:[#allocation2] sm:$0xff] %v251
    // Predicated region
    $region34: #{tpu_custom_call.1} parent=1 // pred_check
      _
    $region35: #{tpu_custom_call.1} parent=1 // pred_check_branch
      %254 = sbr.rel (%p29) target = $region37
    $region36: #{tpu_custom_call.1} parent=1 // pred_region
      %v255 = vld [vmem:[#allocation2] sm:$0xff]
      %v256 = vld [vmem:[%s3] sm:$0xff]
      %258 = vset.pattern.permute.xlu0 0
      %259 = vperm.xlu0 %258, %v256
      %v260 = vpop.permute.xlu0 %259
      %v262 = vmul.f32 %v255, %v260
      %v263 = vpack.c.bf16 %v262, %v262
      %v264 = vld [vmem:[%s5] sm:$0xf]
      %v265 = vld [vmem:[%s5 + $0x4] sm:$0xf]
      %v266 = vld [vmem:[%s5 + $0x8] sm:$0xf]
      %v267 = vld [vmem:[%s5 + $0xc] sm:$0xf]
      %v268 = vld [vmem:[%s5 + $0x10] sm:$0xf]
      %v269 = vld [vmem:[%s5 + $0x14] sm:$0xf]
      %v270 = vld [vmem:[%s5 + $0x18] sm:$0xf]
      %v271 = vld [vmem:[%s5 + $0x1c] sm:$0xf]
      %v272 = vld [vmem:[%s5 + $0x20] sm:$0xf]
      %v273 = vld [vmem:[%s5 + $0x24] sm:$0xf]
      %v274 = vld [vmem:[%s5 + $0x28] sm:$0xf]
      %v275 = vld [vmem:[%s5 + $0x2c] sm:$0xf]
      %v276 = vld [vmem:[%s5 + $0x30] sm:$0xf]
      %v277 = vld [vmem:[%s5 + $0x34] sm:$0xf]
      %v278 = vld [vmem:[%s5 + $0x38] sm:$0xf]
      %v279 = vld [vmem:[%s5 + $0x3c] sm:$0xf]
      %v280 = vld [vmem:[%s6] sm:$0x1]
      %v282 = vperm.slane %v280, 0
      %v300 = vunpack.c.l.b16 %v264
      %v301 = vunpack.c.l.b16 %v265
      %v302 = vunpack.c.l.b16 %v266
      %v303 = vunpack.c.l.b16 %v267
      %v304 = vunpack.c.l.b16 %v268
      %v305 = vunpack.c.l.b16 %v269
      %v306 = vunpack.c.l.b16 %v270
      %v307 = vunpack.c.l.b16 %v271
      %v308 = vunpack.c.l.b16 %v272
      %v309 = vunpack.c.l.b16 %v273
      %v310 = vunpack.c.l.b16 %v274
      %v311 = vunpack.c.l.b16 %v275
      %v312 = vunpack.c.l.b16 %v276
      %v313 = vunpack.c.l.b16 %v277
      %v314 = vunpack.c.l.b16 %v278
      %v315 = vunpack.c.l.b16 %v279
      %v316 = vpack.c.b16 %v301, %v300
      %v317 = vpack.c.b16 %v303, %v302
      %v318 = vpack.c.b16 %v305, %v304
      %v319 = vpack.c.b16 %v307, %v306
      %v320 = vpack.c.b16 %v309, %v308
      %v321 = vpack.c.b16 %v311, %v310
      %v322 = vpack.c.b16 %v313, %v312
      %v323 = vpack.c.b16 %v315, %v314
      %332 = vmatpush.bf16.msra.mxu0 %v323
      %333 = vmatpush.bf16.msra.mxu0 %v322
      %334 = vmatpush.bf16.msra.mxu0 %v321
      %335 = vmatpush.bf16.msra.mxu0 %v320
      %336 = vmatpush.bf16.msra.mxu0 %v319
      %337 = vmatpush.bf16.msra.mxu0 %v318
      %338 = vmatpush.bf16.msra.mxu0 %v317
      %339 = vmatpush.bf16.msra.mxu0 %v316
      %340 = vmatmul.bf16.gmra.mxu0 %v263
      %v341 = vpop.f32.mrf.mxu0
      %v342 = vadd.f32 %v282, %v341
      %v343 = vpop.f32.mrf.mxu0
      %344 = vdwg.mxu0
      %345 = vst [vmem:[#allocation3] sm:$0xff] %v342
    $region37: #{tpu_custom_call.1} parent=1 // pred_fallthru
      _
    // Predicated region
    $region38: #{tpu_custom_call.1} parent=1 // pred_check
      _
    $region39: #{tpu_custom_call.1} parent=1 // pred_check_branch
      %347 = sbr.rel (0) target = $region41
    $region40: #{tpu_custom_call.1} parent=1 // pred_region
      %349 = vsyncadd [#allocation4], 0
      %s351 = sshll.u32 [#allocation3], 4
      %s352 = int_to_ptr.vmem [resolvable:$true] %s351
      %s353 = sshll.u32 %s7, 4
      %s354 = int_to_ptr.hbm [resolvable:$true] %s353
      %356 = dma.vmem_to_hbm [thread:$0]  %s352, 128, %s354, [#allocation4]
    $region41: #{tpu_custom_call.1} parent=1 // pred_fallthru
      _
    // Predicated region
    $region42: #{tpu_custom_call.1} parent=1 // pred_check
      _
    $region43: #{tpu_custom_call.1} parent=1 // pred_check_branch
      %358 = sbr.rel (0) target = $region45
    $region44: #{tpu_custom_call.1} parent=1 // pred_region
      %360 = dma.done [#allocation4], 128
    $region45: #{tpu_custom_call.1} parent=1 // pred_fallthru
      _
    %361 = vsyncpa [#allocation4], 1

</llo_original>
